<compile_context>
chip_gen: v5e
topology: v5e:2x2
jax: 0.10.0
libtpu: 0.0.40
codegen_flags: <defaults>
</compile_context>

<pallas_src>
import functools

import jax
import jax.numpy as jnp
from jax.experimental import pallas as pl
from jax.experimental.pallas import tpu as pltpu


def mha_kernel(x_ref, wq_ref, wk_ref, wv_ref, wp_ref, bp_ref, o_ref,
               kc_ref, vc_ref, ctx_ref, *, num_heads):
    # x_ref  : (1, T, C)   bf16 activations (full sequence, one batch row)
    # wq_ref : (C, C)      bf16, heads packed head-major on columns, scale folded in
    # wk_ref : (C, C)      bf16
    # wv_ref : (C, C)      bf16
    # wp_ref : (C, Cp)     bf16 output projection (lane-padded to Cp)
    # bp_ref : (1, Cp)     f32 bias (zero past C)
    # o_ref  : (1, TQ, Cp)
    # kc_ref/vc_ref : (T, C) bf16 scratch  - cached K/V projections for this batch row
    # ctx_ref        : (TQ, C) f32 scratch - per-head attention outputs, head-major cols
    T, C = x_ref.shape[1], x_ref.shape[2]
    TQ, Cp = o_ref.shape[1], o_ref.shape[2]
    H = num_heads
    Dh = C // H

    qi = pl.program_id(1)
    q_start = pl.multiple_of(qi * TQ, TQ)

    # --- K/V projections: computed once per batch row (first query tile only),
    #     cached in VMEM scratch and reused by every other query tile.
    @pl.when(qi == 0)
    def _():
        x_full = x_ref[0]                                        # (T, C) bf16
        kc_ref[...] = jnp.dot(x_full, wk_ref[...],
                              preferred_element_type=jnp.float32).astype(jnp.bfloat16)
        vc_ref[...] = jnp.dot(x_full, wv_ref[...],
                              preferred_element_type=jnp.float32).astype(jnp.bfloat16)

    # --- Q projection for this query tile (scale already folded into Wq).
    if TQ == T:
        x_q = x_ref[0]                                           # (TQ, C) bf16
    else:
        x_q = x_ref[0, pl.ds(q_start, TQ), :]
    q_all = jnp.dot(x_q, wq_ref[...],
                    preferred_element_type=jnp.float32).astype(jnp.bfloat16)  # (TQ, C)

    # --- Causal mask for this query tile, hoisted out of the head loop.
    row = jax.lax.broadcasted_iota(jnp.int32, (TQ, T), 0) + q_start
    col = jax.lax.broadcasted_iota(jnp.int32, (TQ, T), 1)
    keep = col <= row
    neg = jnp.float32(-1e30)          # finite: robust even for fully-masked rows

    k_all = kc_ref[...]               # (T, C) bf16, cached
    v_all = vc_ref[...]               # (T, C) bf16, cached

    # --- Per-head attention; contexts land head-major into ctx scratch.
    for h in range(H):                # static loop
        lo = h * Dh
        q_h = q_all[:, lo:lo + Dh]    # (TQ, Dh) bf16
        k_h = k_all[:, lo:lo + Dh]    # (T,  Dh) bf16
        v_h = v_all[:, lo:lo + Dh]    # (T,  Dh) bf16

        # scores: q @ k^T via dot_general (no explicit transpose); f32 accumulate
        s = jax.lax.dot_general(q_h, k_h, (((1,), (1,)), ((), ())),
                                preferred_element_type=jnp.float32)   # (TQ, T)
        s = jnp.where(keep, s, neg)
        s = s - jnp.max(s, axis=-1, keepdims=True)
        p = jnp.exp(s)                                                # f32 softmax
        p = p * pl.reciprocal(jnp.sum(p, axis=-1, keepdims=True), approx=True)
        # TODO(synk): attention dropout omitted (inference-mode identity).

        o_h = jnp.dot(p.astype(jnp.bfloat16), v_h,
                      preferred_element_type=jnp.float32)             # (TQ, Dh) f32
        ctx_ref[:, lo:lo + Dh] = o_h

    # --- Single fused output projection (contraction K = C) + bias.
    out = jnp.dot(ctx_ref[...].astype(jnp.bfloat16), wp_ref[...],
                  preferred_element_type=jnp.float32) + bp_ref[...].astype(jnp.float32)
    o_ref[0] = out.astype(o_ref.dtype)
    # TODO(synk): output dropout omitted (inference-mode identity).


def _pick_tile(total, max_tile):
    """Largest divisor of `total` <= max_tile, preferring multiples of 256/128/8."""
    if total <= max_tile:
        return total
    for step in (256, 128, 8):
        t = (max_tile // step) * step
        while t >= step:
            if total % t == 0:
                return t
            t -= step
    return total


def _vmem_limit_bytes(T, TQ, C, Cp):
    """Rough per-core VMEM budget (bytes) for this kernel, clamped to sane bounds."""
    bf, f32 = 2, 4
    est = (
        2 * T * C * bf                      # x block (double-buffered)
        + 2 * (3 * C * C + C * Cp) * bf     # weights (worst-case double-buffered)
        + 2 * Cp * f32                      # bias
        + 2 * TQ * Cp * f32                 # output block (double-buffered)
        + 2 * T * C * bf                    # K/V caches
        + TQ * C * f32                      # ctx scratch
        + 6 * TQ * max(T, Cp) * f32         # score slab / softmax temporaries headroom
    )
    mib = 1 << 20
    return int(min(max(2 * est, 32 * mib), 96 * mib))


def multi_head_attention(x, wq, wk, wv, wp, bp, *, q_tile=None):
    """x: (B, T, C); wq/wk/wv: (H, C, Dh); wp: (C, C); bp: (1, C) -> (B, T, C)."""
    B, T, C = x.shape
    H, C2, Dh = wq.shape
    assert C2 == C and H * Dh == C

    scale = C ** (-0.5)                     # module uses n_embd**-0.5 (intentional)

    # Pack per-head projection weights into lane-dense (C, C) matrices,
    # head-major along columns (matches torch.cat([...heads...], dim=-1)).
    def pack(w):  # (H, C, Dh) -> (C, H*Dh)
        return jnp.transpose(w, (1, 0, 2)).reshape(C, H * Dh)

    wq_p = (pack(wq) * scale).astype(jnp.bfloat16)   # fold score scale into Wq (free)
    wk_p = pack(wk).astype(jnp.bfloat16)
    wv_p = pack(wv).astype(jnp.bfloat16)

    # Lane-dense output: pad the projection N dim up to a multiple of 128.
    Cp = ((C + 127) // 128) * 128
    if Cp != C:
        wp_pad = jnp.pad(wp, ((0, 0), (0, Cp - C)))
        bp_pad = jnp.pad(bp, ((0, 0), (0, Cp - C)))
    else:
        wp_pad, bp_pad = wp, bp
    wp_p = wp_pad.astype(jnp.bfloat16)
    bp_p = bp_pad.astype(jnp.float32)

    x_bf = x.astype(jnp.bfloat16)           # half the activation DMA / VMEM

    TQ = q_tile if q_tile is not None else _pick_tile(T, 256)
    assert T % TQ == 0 and (TQ == T or TQ % 8 == 0)

    grid = (B, T // TQ)                     # batch "parallel", query tiles "arbitrary"

    in_specs = [
        pl.BlockSpec((1, T, C), lambda b, qi: (b, 0, 0)),     # x (full sequence, bf16)
        pl.BlockSpec((C, C), lambda b, qi: (0, 0)),           # packed Wq (resident)
        pl.BlockSpec((C, C), lambda b, qi: (0, 0)),           # packed Wk
        pl.BlockSpec((C, C), lambda b, qi: (0, 0)),           # packed Wv
        pl.BlockSpec((C, Cp), lambda b, qi: (0, 0)),          # W_proj (lane-padded)
        pl.BlockSpec((1, Cp), lambda b, qi: (0, 0)),          # proj bias
    ]
    out_specs = pl.BlockSpec((1, TQ, Cp), lambda b, qi: (b, qi, 0))

    kernel = functools.partial(mha_kernel, num_heads=H)

    out = pl.pallas_call(
        kernel,
        out_shape=jax.ShapeDtypeStruct((B, T, Cp), x.dtype),
        grid_spec=pltpu.PrefetchScalarGridSpec(
            num_scalar_prefetch=0,
            grid=grid,
            in_specs=in_specs,
            out_specs=out_specs,
            scratch_shapes=[
                pltpu.VMEM((T, C), jnp.bfloat16),    # cached K projection
                pltpu.VMEM((T, C), jnp.bfloat16),    # cached V projection
                pltpu.VMEM((TQ, C), jnp.float32),    # per-head contexts (head-major cols)
            ],
        ),
        compiler_params=pltpu.CompilerParams(
            dimension_semantics=("parallel", "arbitrary"),
            vmem_limit_bytes=_vmem_limit_bytes(T, TQ, C, Cp),
        ),
    )(x_bf, wq_p, wk_p, wv_p, wp_p, bp_p)

    return out[..., :C] if Cp != C else out


def _reference(x, wq, wk, wv, wp, bp):
    """Pure-JAX f32 reference mirroring the PyTorch forward (eval mode)."""
    B, T, C = x.shape
    H, _, Dh = wq.shape
    scale = C ** (-0.5)
    tril = jnp.tril(jnp.ones((T, T), dtype=bool))
    outs = []
    for h in range(H):
        q = x @ wq[h]
        k = x @ wk[h]
        v = x @ wv[h]
        wei = (q @ jnp.swapaxes(k, -1, -2)) * scale
        wei = jnp.where(tril[None], wei, -jnp.inf)
        wei = jax.nn.softmax(wei, axis=-1)
        outs.append(wei @ v)
    out = jnp.concatenate(outs, axis=-1)
    return out @ wp + bp[0]


if __name__ == "__main__":
    # Small shapes consistent with the module.
    B, T = 2, 8                      # batch, sequence (<= block_size)
    num_heads, head_size = 4, 8
    n_embd = num_heads * head_size   # 32
    dropout = 0.0                    # inference-mode identity

    key = jax.random.PRNGKey(0)
    kx, kq, kk, kv, kp, kb = jax.random.split(key, 6)

    x = jax.random.normal(kx, (B, T, n_embd), dtype=jnp.float32)
    wq = jax.random.normal(kq, (num_heads, n_embd, head_size), dtype=jnp.float32) * 0.1
    wk = jax.random.normal(kk, (num_heads, n_embd, head_size), dtype=jnp.float32) * 0.1
    wv = jax.random.normal(kv, (num_heads, n_embd, head_size), dtype=jnp.float32) * 0.1
    wp = jax.random.normal(kp, (n_embd, n_embd), dtype=jnp.float32) * 0.1
    bp = jax.random.normal(kb, (1, n_embd), dtype=jnp.float32) * 0.1

    out = jax.block_until_ready(multi_head_attention(x, wq, wk, wv, wp, bp))
    ref = jax.block_until_ready(_reference(x, wq, wk, wv, wp, bp))

    assert out.shape == (B, T, n_embd)
    # bf16 matmul operands + approx reciprocal -> modest tolerance vs f32 reference.
    assert jnp.allclose(out, ref, atol=4e-2, rtol=4e-2), "mismatch vs reference"

    print("KERNEL_OK")
</pallas_src>

<mosaic_0001>
module attributes {stable_mosaic.version = 11 : i64} {
  func.func @mha_kernel(%arg0: i32, %arg1: i32, %arg2: memref<1x8x32xbf16, #tpu.memory_space<vmem>>, %arg3: memref<32x32xbf16, #tpu.memory_space<vmem>>, %arg4: memref<32x32xbf16, #tpu.memory_space<vmem>>, %arg5: memref<32x32xbf16, #tpu.memory_space<vmem>>, %arg6: memref<32x128xbf16, #tpu.memory_space<vmem>>, %arg7: memref<1x128xf32, #tpu.memory_space<vmem>>, %arg8: memref<1x8x128xf32, #tpu.memory_space<vmem>>, %arg9: memref<8x32xbf16, #tpu.memory_space<vmem>>, %arg10: memref<8x32xbf16, #tpu.memory_space<vmem>>, %arg11: memref<8x32xf32, #tpu.memory_space<vmem>>) attributes {dimension_semantics = [#tpu.dimension_semantics<parallel>, #tpu.dimension_semantics<arbitrary>], iteration_bounds = array<i64: 2, 1>, scalar_prefetch = 0 : i64, scratch_operands = 3 : i64, tpu.core_type = #tpu.core_type<tc>, window_params = [{transform_indices = @transform_0, window_bounds = array<i64: 1, 8, 32>}, {pipeline_mode = #tpu.pipeline_mode<synchronous>, transform_indices = @transform_1, window_bounds = array<i64: 32, 32>}, {pipeline_mode = #tpu.pipeline_mode<synchronous>, transform_indices = @transform_2, window_bounds = array<i64: 32, 32>}, {pipeline_mode = #tpu.pipeline_mode<synchronous>, transform_indices = @transform_3, window_bounds = array<i64: 32, 32>}, {pipeline_mode = #tpu.pipeline_mode<synchronous>, transform_indices = @transform_4, window_bounds = array<i64: 32, 128>}, {pipeline_mode = #tpu.pipeline_mode<synchronous>, transform_indices = @transform_5, window_bounds = array<i64: 1, 128>}, {transform_indices = @transform_6, window_bounds = array<i64: 1, 8, 128>}]} {
    %c8_i32 = arith.constant 8 : i32
    %0 = arith.muli %arg1, %c8_i32 : i32
    %1 = tpu.assume_multiple %0, 8 : i32
    %c0_i32 = arith.constant 0 : i32
    %2 = arith.cmpi eq, %arg1, %c0_i32 : i32
    %3 = arith.extui %2 : i1 to i32
    %c0_i32_0 = arith.constant 0 : i32
    %4 = arith.cmpi ne, %3, %c0_i32_0 : i32
    scf.if %4 {
      %c0_44 = arith.constant 0 : index
      %c0_45 = arith.constant 0 : index
      %c0_46 = arith.constant 0 : index
      %103 = vector.load %arg2[%c0_44, %c0_45, %c0_46] : memref<1x8x32xbf16, #tpu.memory_space<vmem>>, vector<1x8x32xbf16>
      %104 = vector.shape_cast %103 : vector<1x8x32xbf16> to vector<8x32xbf16>
      %c0_47 = arith.constant 0 : index
      %c0_48 = arith.constant 0 : index
      %105 = vector.load %arg4[%c0_47, %c0_48] : memref<32x32xbf16, #tpu.memory_space<vmem>>, vector<32x32xbf16>
      %cst_49 = arith.constant dense<0.000000e+00> : vector<8x32xf32>
      %106 = tpu.matmul %104, %105, %cst_49 {dimension_numbers = #tpu.dot_dimension_numbers<[1], [0], [0], [1], [0, 0, 1, 1], [], []>} : vector<8x32xbf16>, vector<32x32xbf16>, vector<8x32xf32> -> vector<8x32xf32>
      %107 = arith.truncf %106 : vector<8x32xf32> to vector<8x32xbf16>
      %c0_50 = arith.constant 0 : index
      %c0_51 = arith.constant 0 : index
      %108 = vector.load %arg9[%c0_50, %c0_51] : memref<8x32xbf16, #tpu.memory_space<vmem>>, vector<8x32xbf16>
      tpu.vector_store %arg9[%c0_50, %c0_51], %107 {strides = array<i32>} : memref<8x32xbf16, #tpu.memory_space<vmem>>, vector<8x32xbf16>,
      %c0_52 = arith.constant 0 : index
      %c0_53 = arith.constant 0 : index
      %109 = vector.load %arg5[%c0_52, %c0_53] : memref<32x32xbf16, #tpu.memory_space<vmem>>, vector<32x32xbf16>
      %cst_54 = arith.constant dense<0.000000e+00> : vector<8x32xf32>
      %110 = tpu.matmul %104, %109, %cst_54 {dimension_numbers = #tpu.dot_dimension_numbers<[1], [0], [0], [1], [0, 0, 1, 1], [], []>} : vector<8x32xbf16>, vector<32x32xbf16>, vector<8x32xf32> -> vector<8x32xf32>
      %111 = arith.truncf %110 : vector<8x32xf32> to vector<8x32xbf16>
      %c0_55 = arith.constant 0 : index
      %c0_56 = arith.constant 0 : index
      %112 = vector.load %arg10[%c0_55, %c0_56] : memref<8x32xbf16, #tpu.memory_space<vmem>>, vector<8x32xbf16>
      tpu.vector_store %arg10[%c0_55, %c0_56], %111 {strides = array<i32>} : memref<8x32xbf16, #tpu.memory_space<vmem>>, vector<8x32xbf16>,
    } else {
    }
    %c0 = arith.constant 0 : index
    %c0_1 = arith.constant 0 : index
    %c0_2 = arith.constant 0 : index
    %5 = vector.load %arg2[%c0, %c0_1, %c0_2] : memref<1x8x32xbf16, #tpu.memory_space<vmem>>, vector<1x8x32xbf16>
    %6 = vector.shape_cast %5 : vector<1x8x32xbf16> to vector<8x32xbf16>
    %c0_3 = arith.constant 0 : index
    %c0_4 = arith.constant 0 : index
    %7 = vector.load %arg3[%c0_3, %c0_4] : memref<32x32xbf16, #tpu.memory_space<vmem>>, vector<32x32xbf16>
    %cst = arith.constant dense<0.000000e+00> : vector<8x32xf32>
    %8 = tpu.matmul %6, %7, %cst {dimension_numbers = #tpu.dot_dimension_numbers<[1], [0], [0], [1], [0, 0, 1, 1], [], []>} : vector<8x32xbf16>, vector<32x32xbf16>, vector<8x32xf32> -> vector<8x32xf32>
    %9 = arith.truncf %8 : vector<8x32xf32> to vector<8x32xbf16>
    %10 = tpu.iota {dimensions = array<i32: 0>} : vector<8x8xi32>
    %11 = vector.broadcast %1 : i32 to vector<8x8xi32>
    %12 = arith.addi %10, %11 : vector<8x8xi32>
    %13 = tpu.iota {dimensions = array<i32: 1>} : vector<8x8xi32>
    %14 = arith.cmpi sle, %13, %12 : vector<8x8xi32>
    %c0_5 = arith.constant 0 : index
    %c0_6 = arith.constant 0 : index
    %15 = vector.load %arg9[%c0_5, %c0_6] : memref<8x32xbf16, #tpu.memory_space<vmem>>, vector<8x32xbf16>
    %c0_7 = arith.constant 0 : index
    %c0_8 = arith.constant 0 : index
    %16 = vector.load %arg10[%c0_7, %c0_8] : memref<8x32xbf16, #tpu.memory_space<vmem>>, vector<8x32xbf16>
    %17 = vector.extract_strided_slice %9 {offsets = [0, 0], sizes = [8, 8], strides = [1, 1]} : vector<8x32xbf16> to vector<8x8xbf16>
    %18 = vector.extract_strided_slice %15 {offsets = [0, 0], sizes = [8, 8], strides = [1, 1]} : vector<8x32xbf16> to vector<8x8xbf16>
    %19 = vector.extract_strided_slice %16 {offsets = [0, 0], sizes = [8, 8], strides = [1, 1]} : vector<8x32xbf16> to vector<8x8xbf16>
    %cst_9 = arith.constant dense<0.000000e+00> : vector<8x8xf32>
    %20 = tpu.matmul %17, %18, %cst_9 {dimension_numbers = #tpu.dot_dimension_numbers<[1], [1], [0], [0], [0, 0, 1, 0], [], []>} : vector<8x8xbf16>, vector<8x8xbf16>, vector<8x8xf32> -> vector<8x8xf32>
    %cst_10 = arith.constant -1.000000e+30 : f32
    %21 = vector.broadcast %cst_10 : f32 to vector<8x8xf32>
    %22 = arith.select %14, %20, %21 : vector<8x8xi1>, vector<8x8xf32>
    %cst_11 = arith.constant dense<0xFF800000> : vector<8xf32>
    %23 = vector.multi_reduction <maximumf>, %22, %cst_11 [1] : vector<8x8xf32> to vector<8xf32>
    %24 = vector.shape_cast %23 : vector<8xf32> to vector<8x1xf32>
    %25 = vector.broadcast %24 : vector<8x1xf32> to vector<8x8xf32>
    %26 = arith.subf %22, %25 : vector<8x8xf32>
    %27 = math.exp %26 : vector<8x8xf32>
    %cst_12 = arith.constant dense<0.000000e+00> : vector<8xf32>
    %28 = vector.multi_reduction <add>, %27, %cst_12 [1] : vector<8x8xf32> to vector<8xf32>
    %29 = vector.shape_cast %28 : vector<8xf32> to vector<8x1xf32>
    %30 = tpu.reciprocal %29 {approx = true} : vector<8x1xf32> -> vector<8x1xf32>
    %31 = vector.broadcast %30 : vector<8x1xf32> to vector<8x8xf32>
    %32 = arith.mulf %27, %31 : vector<8x8xf32>
    %33 = arith.truncf %32 : vector<8x8xf32> to vector<8x8xbf16>
    %cst_13 = arith.constant dense<0.000000e+00> : vector<8x8xf32>
    %34 = tpu.matmul %33, %19, %cst_13 {dimension_numbers = #tpu.dot_dimension_numbers<[1], [0], [0], [1], [0, 0, 1, 1], [], []>} : vector<8x8xbf16>, vector<8x8xbf16>, vector<8x8xf32> -> vector<8x8xf32>
    %c0_14 = arith.constant 0 : index
    %c0_15 = arith.constant 0 : index
    %35 = vector.load %arg11[%c0_14, %c0_15] : memref<8x32xf32, #tpu.memory_space<vmem>>, vector<8x8xf32>
    tpu.vector_store %arg11[%c0_14, %c0_15], %34 {strides = array<i32>} : memref<8x32xf32, #tpu.memory_space<vmem>>, vector<8x8xf32>,
    %36 = vector.extract_strided_slice %9 {offsets = [0, 8], sizes = [8, 8], strides = [1, 1]} : vector<8x32xbf16> to vector<8x8xbf16>
    %37 = vector.extract_strided_slice %15 {offsets = [0, 8], sizes = [8, 8], strides = [1, 1]} : vector<8x32xbf16> to vector<8x8xbf16>
    %38 = vector.extract_strided_slice %16 {offsets = [0, 8], sizes = [8, 8], strides = [1, 1]} : vector<8x32xbf16> to vector<8x8xbf16>
    %cst_16 = arith.constant dense<0.000000e+00> : vector<8x8xf32>
    %39 = tpu.matmul %36, %37, %cst_16 {dimension_numbers = #tpu.dot_dimension_numbers<[1], [1], [0], [0], [0, 0, 1, 0], [], []>} : vector<8x8xbf16>, vector<8x8xbf16>, vector<8x8xf32> -> vector<8x8xf32>
    %cst_17 = arith.constant -1.000000e+30 : f32
    %40 = vector.broadcast %cst_17 : f32 to vector<8x8xf32>
    %41 = arith.select %14, %39, %40 : vector<8x8xi1>, vector<8x8xf32>
    %cst_18 = arith.constant dense<0xFF800000> : vector<8xf32>
    %42 = vector.multi_reduction <maximumf>, %41, %cst_18 [1] : vector<8x8xf32> to vector<8xf32>
    %43 = vector.shape_cast %42 : vector<8xf32> to vector<8x1xf32>
    %44 = vector.broadcast %43 : vector<8x1xf32> to vector<8x8xf32>
    %45 = arith.subf %41, %44 : vector<8x8xf32>
    %46 = math.exp %45 : vector<8x8xf32>
    %cst_19 = arith.constant dense<0.000000e+00> : vector<8xf32>
    %47 = vector.multi_reduction <add>, %46, %cst_19 [1] : vector<8x8xf32> to vector<8xf32>
    %48 = vector.shape_cast %47 : vector<8xf32> to vector<8x1xf32>
    %49 = tpu.reciprocal %48 {approx = true} : vector<8x1xf32> -> vector<8x1xf32>
    %50 = vector.broadcast %49 : vector<8x1xf32> to vector<8x8xf32>
    %51 = arith.mulf %46, %50 : vector<8x8xf32>
    %52 = arith.truncf %51 : vector<8x8xf32> to vector<8x8xbf16>
    %cst_20 = arith.constant dense<0.000000e+00> : vector<8x8xf32>
    %53 = tpu.matmul %52, %38, %cst_20 {dimension_numbers = #tpu.dot_dimension_numbers<[1], [0], [0], [1], [0, 0, 1, 1], [], []>} : vector<8x8xbf16>, vector<8x8xbf16>, vector<8x8xf32> -> vector<8x8xf32>
    %c0_21 = arith.constant 0 : index
    %c8 = arith.constant 8 : index
    %54 = vector.load %arg11[%c0_21, %c8] : memref<8x32xf32, #tpu.memory_space<vmem>>, vector<8x8xf32>
    tpu.vector_store %arg11[%c0_21, %c8], %53 {strides = array<i32>} : memref<8x32xf32, #tpu.memory_space<vmem>>, vector<8x8xf32>,
    %55 = vector.extract_strided_slice %9 {offsets = [0, 16], sizes = [8, 8], strides = [1, 1]} : vector<8x32xbf16> to vector<8x8xbf16>
    %56 = vector.extract_strided_slice %15 {offsets = [0, 16], sizes = [8, 8], strides = [1, 1]} : vector<8x32xbf16> to vector<8x8xbf16>
    %57 = vector.extract_strided_slice %16 {offsets = [0, 16], sizes = [8, 8], strides = [1, 1]} : vector<8x32xbf16> to vector<8x8xbf16>
    %cst_22 = arith.constant dense<0.000000e+00> : vector<8x8xf32>
    %58 = tpu.matmul %55, %56, %cst_22 {dimension_numbers = #tpu.dot_dimension_numbers<[1], [1], [0], [0], [0, 0, 1, 0], [], []>} : vector<8x8xbf16>, vector<8x8xbf16>, vector<8x8xf32> -> vector<8x8xf32>
    %cst_23 = arith.constant -1.000000e+30 : f32
    %59 = vector.broadcast %cst_23 : f32 to vector<8x8xf32>
    %60 = arith.select %14, %58, %59 : vector<8x8xi1>, vector<8x8xf32>
    %cst_24 = arith.constant dense<0xFF800000> : vector<8xf32>
    %61 = vector.multi_reduction <maximumf>, %60, %cst_24 [1] : vector<8x8xf32> to vector<8xf32>
    %62 = vector.shape_cast %61 : vector<8xf32> to vector<8x1xf32>
    %63 = vector.broadcast %62 : vector<8x1xf32> to vector<8x8xf32>
    %64 = arith.subf %60, %63 : vector<8x8xf32>
    %65 = math.exp %64 : vector<8x8xf32>
    %cst_25 = arith.constant dense<0.000000e+00> : vector<8xf32>
    %66 = vector.multi_reduction <add>, %65, %cst_25 [1] : vector<8x8xf32> to vector<8xf32>
    %67 = vector.shape_cast %66 : vector<8xf32> to vector<8x1xf32>
    %68 = tpu.reciprocal %67 {approx = true} : vector<8x1xf32> -> vector<8x1xf32>
    %69 = vector.broadcast %68 : vector<8x1xf32> to vector<8x8xf32>
    %70 = arith.mulf %65, %69 : vector<8x8xf32>
    %71 = arith.truncf %70 : vector<8x8xf32> to vector<8x8xbf16>
    %cst_26 = arith.constant dense<0.000000e+00> : vector<8x8xf32>
    %72 = tpu.matmul %71, %57, %cst_26 {dimension_numbers = #tpu.dot_dimension_numbers<[1], [0], [0], [1], [0, 0, 1, 1], [], []>} : vector<8x8xbf16>, vector<8x8xbf16>, vector<8x8xf32> -> vector<8x8xf32>
    %c0_27 = arith.constant 0 : index
    %c16 = arith.constant 16 : index
    %73 = vector.load %arg11[%c0_27, %c16] : memref<8x32xf32, #tpu.memory_space<vmem>>, vector<8x8xf32>
    tpu.vector_store %arg11[%c0_27, %c16], %72 {strides = array<i32>} : memref<8x32xf32, #tpu.memory_space<vmem>>, vector<8x8xf32>,
    %74 = vector.extract_strided_slice %9 {offsets = [0, 24], sizes = [8, 8], strides = [1, 1]} : vector<8x32xbf16> to vector<8x8xbf16>
    %75 = vector.extract_strided_slice %15 {offsets = [0, 24], sizes = [8, 8], strides = [1, 1]} : vector<8x32xbf16> to vector<8x8xbf16>
    %76 = vector.extract_strided_slice %16 {offsets = [0, 24], sizes = [8, 8], strides = [1, 1]} : vector<8x32xbf16> to vector<8x8xbf16>
    %cst_28 = arith.constant dense<0.000000e+00> : vector<8x8xf32>
    %77 = tpu.matmul %74, %75, %cst_28 {dimension_numbers = #tpu.dot_dimension_numbers<[1], [1], [0], [0], [0, 0, 1, 0], [], []>} : vector<8x8xbf16>, vector<8x8xbf16>, vector<8x8xf32> -> vector<8x8xf32>
    %cst_29 = arith.constant -1.000000e+30 : f32
    %78 = vector.broadcast %cst_29 : f32 to vector<8x8xf32>
    %79 = arith.select %14, %77, %78 : vector<8x8xi1>, vector<8x8xf32>
    %cst_30 = arith.constant dense<0xFF800000> : vector<8xf32>
    %80 = vector.multi_reduction <maximumf>, %79, %cst_30 [1] : vector<8x8xf32> to vector<8xf32>
    %81 = vector.shape_cast %80 : vector<8xf32> to vector<8x1xf32>
    %82 = vector.broadcast %81 : vector<8x1xf32> to vector<8x8xf32>
    %83 = arith.subf %79, %82 : vector<8x8xf32>
    %84 = math.exp %83 : vector<8x8xf32>
    %cst_31 = arith.constant dense<0.000000e+00> : vector<8xf32>
    %85 = vector.multi_reduction <add>, %84, %cst_31 [1] : vector<8x8xf32> to vector<8xf32>
    %86 = vector.shape_cast %85 : vector<8xf32> to vector<8x1xf32>
    %87 = tpu.reciprocal %86 {approx = true} : vector<8x1xf32> -> vector<8x1xf32>
    %88 = vector.broadcast %87 : vector<8x1xf32> to vector<8x8xf32>
    %89 = arith.mulf %84, %88 : vector<8x8xf32>
    %90 = arith.truncf %89 : vector<8x8xf32> to vector<8x8xbf16>
    %cst_32 = arith.constant dense<0.000000e+00> : vector<8x8xf32>
    %91 = tpu.matmul %90, %76, %cst_32 {dimension_numbers = #tpu.dot_dimension_numbers<[1], [0], [0], [1], [0, 0, 1, 1], [], []>} : vector<8x8xbf16>, vector<8x8xbf16>, vector<8x8xf32> -> vector<8x8xf32>
    %c0_33 = arith.constant 0 : index
    %c24 = arith.constant 24 : index
    %92 = vector.load %arg11[%c0_33, %c24] : memref<8x32xf32, #tpu.memory_space<vmem>>, vector<8x8xf32>
    tpu.vector_store %arg11[%c0_33, %c24], %91 {strides = array<i32>} : memref<8x32xf32, #tpu.memory_space<vmem>>, vector<8x8xf32>,
    %c0_34 = arith.constant 0 : index
    %c0_35 = arith.constant 0 : index
    %93 = vector.load %arg11[%c0_34, %c0_35] : memref<8x32xf32, #tpu.memory_space<vmem>>, vector<8x32xf32>
    %94 = arith.truncf %93 : vector<8x32xf32> to vector<8x32xbf16>
    %c0_36 = arith.constant 0 : index
    %c0_37 = arith.constant 0 : index
    %95 = vector.load %arg6[%c0_36, %c0_37] : memref<32x128xbf16, #tpu.memory_space<vmem>>, vector<32x128xbf16>
    %cst_38 = arith.constant dense<0.000000e+00> : vector<8x128xf32>
    %96 = tpu.matmul %94, %95, %cst_38 {dimension_numbers = #tpu.dot_dimension_numbers<[1], [0], [0], [1], [0, 0, 1, 1], [], []>} : vector<8x32xbf16>, vector<32x128xbf16>, vector<8x128xf32> -> vector<8x128xf32>
    %c0_39 = arith.constant 0 : index
    %c0_40 = arith.constant 0 : index
    %97 = vector.load %arg7[%c0_39, %c0_40] : memref<1x128xf32, #tpu.memory_space<vmem>>, vector<1x128xf32>
    %98 = vector.broadcast %97 : vector<1x128xf32> to vector<8x128xf32>
    %99 = arith.addf %96, %98 : vector<8x128xf32>
    %c0_41 = arith.constant 0 : index
    %c0_42 = arith.constant 0 : index
    %c0_43 = arith.constant 0 : index
    %100 = vector.load %arg8[%c0_41, %c0_42, %c0_43] : memref<1x8x128xf32, #tpu.memory_space<vmem>>, vector<1x8x128xf32>
    %101 = vector.shape_cast %100 : vector<1x8x128xf32> to vector<8x128xf32>
    %102 = vector.shape_cast %99 : vector<8x128xf32> to vector<1x8x128xf32>
    tpu.vector_store %arg8[%c0_41, %c0_42, %c0_43], %102 {strides = array<i32>} : memref<1x8x128xf32, #tpu.memory_space<vmem>>, vector<1x8x128xf32>,
    return
  }
  func.func @transform_0(%arg0: i32, %arg1: i32) -> (i32, i32, i32) {
    %c0_i32 = arith.constant 0 : i32
    %c0_i32_0 = arith.constant 0 : i32
    %c0_i32_1 = arith.constant 0 : i32
    return %arg0, %c0_i32, %c0_i32_0 : i32, i32, i32
  }
  func.func @transform_1(%arg0: i32, %arg1: i32) -> (i32, i32) {
    %c0_i32 = arith.constant 0 : i32
    %c0_i32_0 = arith.constant 0 : i32
    %c0_i32_1 = arith.constant 0 : i32
    return %c0_i32, %c0_i32_0 : i32, i32
  }
  func.func @transform_2(%arg0: i32, %arg1: i32) -> (i32, i32) {
    %c0_i32 = arith.constant 0 : i32
    %c0_i32_0 = arith.constant 0 : i32
    %c0_i32_1 = arith.constant 0 : i32
    return %c0_i32, %c0_i32_0 : i32, i32
  }
  func.func @transform_3(%arg0: i32, %arg1: i32) -> (i32, i32) {
    %c0_i32 = arith.constant 0 : i32
    %c0_i32_0 = arith.constant 0 : i32
    %c0_i32_1 = arith.constant 0 : i32
    return %c0_i32, %c0_i32_0 : i32, i32
  }
  func.func @transform_4(%arg0: i32, %arg1: i32) -> (i32, i32) {
    %c0_i32 = arith.constant 0 : i32
    %c0_i32_0 = arith.constant 0 : i32
    %c0_i32_1 = arith.constant 0 : i32
    return %c0_i32, %c0_i32_0 : i32, i32
  }
  func.func @transform_5(%arg0: i32, %arg1: i32) -> (i32, i32) {
    %c0_i32 = arith.constant 0 : i32
    %c0_i32_0 = arith.constant 0 : i32
    %c0_i32_1 = arith.constant 0 : i32
    return %c0_i32, %c0_i32_0 : i32, i32
  }
  func.func @transform_6(%arg0: i32, %arg1: i32) -> (i32, i32, i32) {
    %c0_i32 = arith.constant 0 : i32
    %c0_i32_0 = arith.constant 0 : i32
    return %arg0, %arg1, %c0_i32 : i32, i32, i32
  }
}

</mosaic_0001>

<llo_original>
// kernel: tpu_custom_call.1
$region0: #{tpu_custom_call.1}
  #allocation0 [shape = 'u32[]', space=smem, size = 0x4, offset = 0x4, fixed_abs, tag = 'smem constant byte address 0x4 - core index']
  #allocation1 [shape = 'u32[72,128]{1,0:T(1,128)}', space=vmem, size = 0x9000, scoped, tag = 'internal scratch']
  #allocation2 [shape = 'bf16[8,32]{1,0:T(8,128)(2,1)}', space=vmem, size = 0x800, scoped, tag = 'scratch operand']
  #allocation3 [shape = 'bf16[8,32]{1,0:T(8,128)(2,1)}', space=vmem, size = 0x800, scoped, tag = 'scratch operand']
  #allocation4 [shape = 'f32[8,32]{1,0:T(8,128)}', space=vmem, size = 0x1000, scoped, tag = 'scratch operand']
  %s0 = inlined_call_operand.hbm [shape: bf16[2,8,32], index: 0, kind: input, shape index: {}]
  %s1 = inlined_call_operand.hbm [shape: bf16[32,32], index: 1, kind: input, shape index: {}]
  %s2 = inlined_call_operand.hbm [shape: bf16[32,32], index: 2, kind: input, shape index: {}]
  %s3 = inlined_call_operand.hbm [shape: bf16[32,32], index: 3, kind: input, shape index: {}]
  %s4 = inlined_call_operand.hbm [shape: bf16[32,128], index: 4, kind: input, shape index: {}]
  %s5 = inlined_call_operand.vmem [shape: f32[1,128], index: 5, kind: input, shape index: {}]
  %s6 = inlined_call_operand.hbm [shape: f32[2,8,128], index: 6, kind: output, shape index: {}]
  %s7 = sld [smem:[#allocation0]]
  $region81: #{tpu_custom_call.1} parent=0
    _
  %s9 = ssub.s32 1, %s7
  %s10 = scalar_select 0, %s9, %s7
  $region1: #{tpu_custom_call.1} parent=0
    #allocation5 [shape = 'u8[4096]{0}', space=vmem, size = 0x1000, scoped, tag = 'input window, operand 0']
    #allocation6 [shape = 's32[2]{0}', space=sflag, size = 0x8, scoped, tag = 'scoped memory for tpu_custom_call.1']
    #allocation7 [shape = 's32[2]{0}', space=sflag, size = 0x8, scoped, tag = 'scoped memory for tpu_custom_call.1']
    #allocation8 [shape = 'u8[8192]{0}', space=vmem, size = 0x2000, scoped, tag = 'input window, operand 1, single buffered']
    #allocation9 [shape = 's32[1]{0}', space=sflag, size = 0x4, scoped, tag = 'scoped memory for tpu_custom_call.1']
    #allocation10 [shape = 'u8[8192]{0}', space=vmem, size = 0x2000, scoped, tag = 'input window, operand 2, single buffered']
    #allocation11 [shape = 'u8[8192]{0}', space=vmem, size = 0x2000, scoped, tag = 'input window, operand 3, single buffered']
    #allocation12 [shape = 's32[1]{0}', space=sflag, size = 0x4, scoped, tag = 'scoped memory for tpu_custom_call.1']
    #allocation13 [shape = 'u8[8192]{0}', space=vmem, size = 0x2000, scoped, tag = 'input window, operand 4, single buffered']
    #allocation14 [shape = 'u8[8192]{0}', space=vmem, size = 0x2000, scoped, tag = 'output window, operand 0']
    %11 = vsyncpa [#allocation6], 0
    %s12 = scalar_lea.sflag [#allocation6], 1
    %13 = vsyncpa %s12, 0
    %14 = vsyncpa [#allocation9], 0
    %15 = vsyncpa [#allocation12], 0
    %16 = vsyncpa [#allocation7], 0
    %s17 = scalar_lea.sflag [#allocation7], 1
    %18 = vsyncpa %s17, 0
    loop: start=0, step=1, limit=4
    $region2: #{tpu_custom_call.1} parent=1 // loop_pre_header
      _
    $region3: #{tpu_custom_call.1} parent=1 // loop_header
      %s20 = sphi 0, %s24
      %p21 = scmp.ge.s32.totalorder %s20, 4
      %s27 = sphi 0, %s39
      %s28 = sphi 0, %s35
      %s29 = sphi 0, %s27
      %s30 = sphi 0, %s28
      %s31 = sphi 0, %s29
      %s32 = sphi 0, %s30
      %s42 = sphi 0, %s44
      %s45 = sphi 0, %s42
      %s46 = sphi 0, %s45
      %s62 = sphi 0, %s46
      %s66 = sphi 0, %s66
      %s68 = sphi 0, %s66
      %s69 = sphi 0, %s68
      %s83 = sphi 0, %s69
      %s87 = sphi 0, %s87
      %s89 = sphi 0, %s87
      %s90 = sphi 0, %s89
      %s104 = sphi 0, %s90
      %s108 = sphi 0, %s108
      %s110 = sphi 0, %s108
      %s111 = sphi 0, %s110
      %s125 = sphi 0, %s111
      %s129 = sphi 0, %s129
      %s131 = sphi 0, %s129
      %s132 = sphi 0, %s131
      %s146 = sphi 0, %s132
      %s150 = sphi 0, %s150
      %s152 = sphi 0, %s150
      %s153 = sphi 0, %s152
      %s167 = sphi 0, %s153
      %s175 = sphi 0, %s177
      %s178 = sphi 0, %s175
      %s179 = sphi 0, %s178
      %s195 = sphi 0, %s179
    $region4: #{tpu_custom_call.1} parent=1 // loop_header_branch
      %23 = sbr.rel (%p21) target = $region8
    $region5: #{tpu_custom_call.1} parent=1 // loop_body
      %s25 = ssub.s32 %s20, 1
      %s26 = ssub.s32 %s20, 2
      %s33 = sadd.s32 1, %s28
      %p34 = scmp.ge.s32.totalorder %s33, 1
      %s35 = scalar_select %p34, 0, %s33
      %s36 = sadd.s32 1, %s27
      %s37 = scalar_select %p34, %s36, %s27
      %p38 = scmp.ge.s32.totalorder %s37, 2
      %s39 = scalar_select %p38, 0, %s37
      %s40 = ssub.s32 %s27, %s39
      %p41 = scmp.eq.s32.totalorder %s40, 0
      %s43 = sadd.s32 %s42, 1
      %s44 = scalar_select %p41, %s42, %s43
      %p47 = pneg %p41
      %p48 = scmp.eq.s32.totalorder %s20, 1
      %p49 = por %p47, %p48
      %p50 = scmp.ne.s32.totalorder %s42, %s45
      %p51 = scmp.eq.s32.totalorder %s20, 0
      %p52 = por %p50, %p51
      %p53 = scmp.ne.s32.totalorder %s42, %s45
      %p54 = scmp.eq.s32.totalorder %s25, 1
      %p55 = por %p53, %p54
      %p56 = scmp.ne.s32.totalorder %s45, %s46
      %p57 = scmp.eq.s32.totalorder %s25, 0
      %p58 = por %p56, %p57
      %p59 = scmp.ne.s32.totalorder %s45, %s46
      %p60 = scmp.eq.s32.totalorder %s26, 1
      %p61 = por %p59, %p60
      %p63 = scmp.ne.s32.totalorder %s46, %s62
      %p64 = scmp.eq.s32.totalorder %s26, 0
      %p65 = por %p63, %p64
      %s67 = sadd.s32 %s66, 1
      %p70 = scmp.eq.s32.totalorder %s20, 1
      %p71 = scmp.ne.s32.totalorder %s66, %s68
      %p72 = scmp.eq.s32.totalorder %s20, 0
      %p73 = por %p71, %p72
      %p74 = scmp.ne.s32.totalorder %s66, %s68
      %p75 = scmp.eq.s32.totalorder %s25, 1
      %p76 = por %p74, %p75
      %p77 = scmp.ne.s32.totalorder %s68, %s69
      %p78 = scmp.eq.s32.totalorder %s25, 0
      %p79 = por %p77, %p78
      %p80 = scmp.ne.s32.totalorder %s68, %s69
      %p81 = scmp.eq.s32.totalorder %s26, 1
      %p82 = por %p80, %p81
      %p84 = scmp.ne.s32.totalorder %s69, %s83
      %p85 = scmp.eq.s32.totalorder %s26, 0
      %p86 = por %p84, %p85
      %s88 = sadd.s32 %s87, 1
      %p91 = scmp.eq.s32.totalorder %s20, 1
      %p92 = scmp.ne.s32.totalorder %s87, %s89
      %p93 = scmp.eq.s32.totalorder %s20, 0
      %p94 = por %p92, %p93
      %p95 = scmp.ne.s32.totalorder %s87, %s89
      %p96 = scmp.eq.s32.totalorder %s25, 1
      %p97 = por %p95, %p96
      %p98 = scmp.ne.s32.totalorder %s89, %s90
      %p99 = scmp.eq.s32.totalorder %s25, 0
      %p100 = por %p98, %p99
      %p101 = scmp.ne.s32.totalorder %s89, %s90
      %p102 = scmp.eq.s32.totalorder %s26, 1
      %p103 = por %p101, %p102
      %p105 = scmp.ne.s32.totalorder %s90, %s104
      %p106 = scmp.eq.s32.totalorder %s26, 0
      %p107 = por %p105, %p106
      %s109 = sadd.s32 %s108, 1
      %p112 = scmp.eq.s32.totalorder %s20, 1
      %p113 = scmp.ne.s32.totalorder %s108, %s110
      %p114 = scmp.eq.s32.totalorder %s20, 0
      %p115 = por %p113, %p114
      %p116 = scmp.ne.s32.totalorder %s108, %s110
      %p117 = scmp.eq.s32.totalorder %s25, 1
      %p118 = por %p116, %p117
      %p119 = scmp.ne.s32.totalorder %s110, %s111
      %p120 = scmp.eq.s32.totalorder %s25, 0
      %p121 = por %p119, %p120
      %p122 = scmp.ne.s32.totalorder %s110, %s111
      %p123 = scmp.eq.s32.totalorder %s26, 1
      %p124 = por %p122, %p123
      %p126 = scmp.ne.s32.totalorder %s111, %s125
      %p127 = scmp.eq.s32.totalorder %s26, 0
      %p128 = por %p126, %p127
      %s130 = sadd.s32 %s129, 1
      %p133 = scmp.eq.s32.totalorder %s20, 1
      %p134 = scmp.ne.s32.totalorder %s129, %s131
      %p135 = scmp.eq.s32.totalorder %s20, 0
      %p136 = por %p134, %p135
      %p137 = scmp.ne.s32.totalorder %s129, %s131
      %p138 = scmp.eq.s32.totalorder %s25, 1
      %p139 = por %p137, %p138
      %p140 = scmp.ne.s32.totalorder %s131, %s132
      %p141 = scmp.eq.s32.totalorder %s25, 0
      %p142 = por %p140, %p141
      %p143 = scmp.ne.s32.totalorder %s131, %s132
      %p144 = scmp.eq.s32.totalorder %s26, 1
      %p145 = por %p143, %p144
      %p147 = scmp.ne.s32.totalorder %s132, %s146
      %p148 = scmp.eq.s32.totalorder %s26, 0
      %p149 = por %p147, %p148
      %s151 = sadd.s32 %s150, 1
      %p154 = scmp.eq.s32.totalorder %s20, 1
      %p155 = scmp.ne.s32.totalorder %s150, %s152
      %p156 = scmp.eq.s32.totalorder %s20, 0
      %p157 = por %p155, %p156
      %p158 = scmp.ne.s32.totalorder %s150, %s152
      %p159 = scmp.eq.s32.totalorder %s25, 1
      %p160 = por %p158, %p159
      %p161 = scmp.ne.s32.totalorder %s152, %s153
      %p162 = scmp.eq.s32.totalorder %s25, 0
      %p163 = por %p161, %p162
      %p164 = scmp.ne.s32.totalorder %s152, %s153
      %p165 = scmp.eq.s32.totalorder %s26, 1
      %p166 = por %p164, %p165
      %p168 = scmp.ne.s32.totalorder %s153, %s167
      %p169 = scmp.eq.s32.totalorder %s26, 0
      %p170 = por %p168, %p169
      %s171 = ssub.s32 %s27, %s39
      %s172 = ssub.s32 %s28, %s35
      %s173 = sor.u32 %s171, %s172
      %p174 = scmp.eq.s32.totalorder %s173, 0
      %s176 = sadd.s32 %s175, 1
      %s177 = scalar_select %p174, %s175, %s176
      %p180 = pneg %p174
      %p181 = scmp.eq.s32.totalorder %s20, 1
      %p182 = por %p180, %p181
      %p183 = scmp.ne.s32.totalorder %s175, %s178
      %p184 = scmp.eq.s32.totalorder %s20, 0
      %p185 = por %p183, %p184
      %p186 = scmp.ne.s32.totalorder %s175, %s178
      %p187 = scmp.eq.s32.totalorder %s25, 1
      %p188 = por %p186, %p187
      %p189 = scmp.ne.s32.totalorder %s178, %s179
      %p190 = scmp.eq.s32.totalorder %s25, 0
      %p191 = por %p189, %p190
      %p192 = scmp.ne.s32.totalorder %s178, %s179
      %p193 = scmp.eq.s32.totalorder %s26, 1
      %p194 = por %p192, %p193
      %p196 = scmp.ne.s32.totalorder %s179, %s195
      %p197 = scmp.eq.s32.totalorder %s26, 0
      %p198 = por %p196, %p197
      %p199 = scmp.le.s32.totalorder 1, %s20
      %p200 = scmp.lt.s32.totalorder %s20, 3
      %p201 = pnand %p199, %p200
      %p202 = pneg %p201
      // Predicated region
      $region9: #{tpu_custom_call.1} parent=5 // pred_check
        _
      $region10: #{tpu_custom_call.1} parent=5 // pred_check_branch
        %204 = sbr.rel (%p201) target = $region12
      $region11: #{tpu_custom_call.1} parent=5 // pred_region
        %s205 = ssub.s32 %s20, 1
        // Predicated region
        $region13: #{tpu_custom_call.1} parent=11 // pred_check
          %p206 = pneg %p79
        $region14: #{tpu_custom_call.1} parent=11 // pred_check_branch
          %208 = sbr.rel (%p206) target = $region16
        $region15: #{tpu_custom_call.1} parent=11 // pred_region
          %210 = vsyncadd [#allocation9], 0
          %s211 = sshll.u32 %s1, 4
          %s212 = int_to_ptr.hbm [resolvable:$true] %s211
          %s213 = sshll.u32 [#allocation8], 4
          %s214 = int_to_ptr.vmem [resolvable:$true] %s213
          %219 = dma.hbm_to_vmem [thread:$0]  %s212, 256, %s214, [#allocation9], 64, 64, 4
        $region16: #{tpu_custom_call.1} parent=11 // pred_fallthru
          _
        // Predicated region
        $region17: #{tpu_custom_call.1} parent=11 // pred_check
          %p220 = pneg %p100
        $region18: #{tpu_custom_call.1} parent=11 // pred_check_branch
          %222 = sbr.rel (%p220) target = $region20
        $region19: #{tpu_custom_call.1} parent=11 // pred_region
          %224 = vsyncadd [#allocation9], 0
          %s225 = sshll.u32 %s2, 4
          %s226 = int_to_ptr.hbm [resolvable:$true] %s225
          %s227 = sshll.u32 [#allocation10], 4
          %s228 = int_to_ptr.vmem [resolvable:$true] %s227
          %233 = dma.hbm_to_vmem [thread:$0]  %s226, 256, %s228, [#allocation9], 64, 64, 4
        $region20: #{tpu_custom_call.1} parent=11 // pred_fallthru
          _
        // Predicated region
        $region21: #{tpu_custom_call.1} parent=11 // pred_check
          %p234 = pneg %p121
        $region22: #{tpu_custom_call.1} parent=11 // pred_check_branch
          %236 = sbr.rel (%p234) target = $region24
        $region23: #{tpu_custom_call.1} parent=11 // pred_region
          %238 = vsyncadd [#allocation12], 0
          %s239 = sshll.u32 %s3, 4
          %s240 = int_to_ptr.hbm [resolvable:$true] %s239
          %s241 = sshll.u32 [#allocation11], 4
          %s242 = int_to_ptr.vmem [resolvable:$true] %s241
          %247 = dma.hbm_to_vmem [thread:$0]  %s240, 256, %s242, [#allocation12], 64, 64, 4
        $region24: #{tpu_custom_call.1} parent=11 // pred_fallthru
          _
        // Predicated region
        $region25: #{tpu_custom_call.1} parent=11 // pred_check
          %p248 = pneg %p142
        $region26: #{tpu_custom_call.1} parent=11 // pred_check_branch
          %250 = sbr.rel (%p248) target = $region28
        $region27: #{tpu_custom_call.1} parent=11 // pred_region
          %252 = vsyncadd [#allocation12], 0
          %s253 = sshll.u32 %s4, 4
          %s254 = int_to_ptr.hbm [resolvable:$true] %s253
          %s255 = sshll.u32 [#allocation13], 4
          %s256 = int_to_ptr.vmem [resolvable:$true] %s255
          %261 = dma.hbm_to_vmem [thread:$0]  %s254, 256, %s256, [#allocation12], 64, 64, 4
        $region28: #{tpu_custom_call.1} parent=11 // pred_fallthru
          _
        // Predicated region
        $region29: #{tpu_custom_call.1} parent=11 // pred_check
          %p262 = pneg %p163
        $region30: #{tpu_custom_call.1} parent=11 // pred_check_branch
          %264 = sbr.rel (%p262) target = $region32
        $region31: #{tpu_custom_call.1} parent=11 // pred_region
          _
        $region32: #{tpu_custom_call.1} parent=11 // pred_fallthru
          _
      $region12: #{tpu_custom_call.1} parent=5 // pred_fallthru
        _
      %p265 = scmp.lt.s32.totalorder %s20, 2
      // Predicated region
      $region33: #{tpu_custom_call.1} parent=5 // pred_check
        %p266 = pneg %p265
      $region34: #{tpu_custom_call.1} parent=5 // pred_check_branch
        %268 = sbr.rel (%p266) target = $region36
      $region35: #{tpu_custom_call.1} parent=5 // pred_region
        // Predicated region
        $region37: #{tpu_custom_call.1} parent=35 // pred_check
          %p269 = pneg %p52
        $region38: #{tpu_custom_call.1} parent=35 // pred_check_branch
          %271 = sbr.rel (%p269) target = $region40
        $region39: #{tpu_custom_call.1} parent=35 // pred_region
          %s272 = sand.u32 %s42, 1
          %s273 = scalar_lea.sflag [#allocation6], %s272
          %s274 = sand.u32 %s42, 1
          %s275 = smul.addr %s274, 4
          %s276 = scalar_lea.vmem [#allocation5], %s275
          %278 = vsyncadd %s273, 0
          %s279 = smul.addr %s27, 4
          %s280 = scalar_lea.hbm %s0, %s279
          %s282 = sshll.u32 %s280, 4
          %s283 = int_to_ptr.hbm [resolvable:$true] %s282
          %s284 = sshll.u32 %s276, 4
          %s285 = int_to_ptr.vmem [resolvable:$true] %s284
          %287 = dma.hbm_to_vmem [thread:$0]  %s283, 64, %s285, %s273
        $region40: #{tpu_custom_call.1} parent=35 // pred_fallthru
          _
      $region36: #{tpu_custom_call.1} parent=5 // pred_fallthru
        _
      %p288 = scmp.le.s32.totalorder 1, %s20
      %p289 = scmp.lt.s32.totalorder %s20, 3
      %p290 = pnand %p288, %p289
      %p291 = pneg %p290
      // Predicated region
      $region41: #{tpu_custom_call.1} parent=5 // pred_check
        _
      $region42: #{tpu_custom_call.1} parent=5 // pred_check_branch
        %293 = sbr.rel (%p290) target = $region44
      $region43: #{tpu_custom_call.1} parent=5 // pred_region
        %s294 = ssub.s32 %s20, 1
        %s295 = sand.u32 %s45, 1
        %s296 = scalar_lea.sflag [#allocation6], %s295
        %s297 = sand.u32 %s45, 1
        %s298 = smul.addr %s297, 4
        %s299 = scalar_lea.vmem [#allocation5], %s298
        // Predicated region
        $region45: #{tpu_custom_call.1} parent=43 // pred_check
          %p300 = pneg %p58
        $region46: #{tpu_custom_call.1} parent=43 // pred_check_branch
          %302 = sbr.rel (%p300) target = $region48
        $region47: #{tpu_custom_call.1} parent=43 // pred_region
          %304 = dma.done %s296, 64
        $region48: #{tpu_custom_call.1} parent=43 // pred_fallthru
          _
        // Predicated region
        $region49: #{tpu_custom_call.1} parent=43 // pred_check
          %p305 = pneg %p79
        $region50: #{tpu_custom_call.1} parent=43 // pred_check_branch
          %307 = sbr.rel (%p305) target = $region52
        $region51: #{tpu_custom_call.1} parent=43 // pred_region
          %309 = dma.done [#allocation9], 256
        $region52: #{tpu_custom_call.1} parent=43 // pred_fallthru
          _
        // Predicated region
        $region53: #{tpu_custom_call.1} parent=43 // pred_check
          %p310 = pneg %p100
        $region54: #{tpu_custom_call.1} parent=43 // pred_check_branch
          %312 = sbr.rel (%p310) target = $region56
        $region55: #{tpu_custom_call.1} parent=43 // pred_region
          %314 = dma.done [#allocation9], 256
        $region56: #{tpu_custom_call.1} parent=43 // pred_fallthru
          _
        // Predicated region
        $region57: #{tpu_custom_call.1} parent=43 // pred_check
          %p315 = pneg %p121
        $region58: #{tpu_custom_call.1} parent=43 // pred_check_branch
          %317 = sbr.rel (%p315) target = $region60
        $region59: #{tpu_custom_call.1} parent=43 // pred_region
          %319 = dma.done [#allocation12], 256
        $region60: #{tpu_custom_call.1} parent=43 // pred_fallthru
          _
        // Predicated region
        $region61: #{tpu_custom_call.1} parent=43 // pred_check
          %p320 = pneg %p142
        $region62: #{tpu_custom_call.1} parent=43 // pred_check_branch
          %322 = sbr.rel (%p320) target = $region64
        $region63: #{tpu_custom_call.1} parent=43 // pred_region
          %324 = dma.done [#allocation12], 256
        $region64: #{tpu_custom_call.1} parent=43 // pred_fallthru
          _
        %s325 = sand.u32 %s45, 1
        %s326 = scalar_lea.sflag [#allocation6], %s325
        %s327 = sand.u32 %s45, 1
        %s328 = smul.addr %s327, 4
        %s329 = scalar_lea.vmem [#allocation5], %s328
        %p330 = pneg %p58
        %p331 = pneg %p55
        %p332 = pneg %p79
        %p333 = pneg %p76
        %p334 = pneg %p100
        %p335 = pneg %p97
        %p336 = pneg %p121
        %p337 = pneg %p118
        %p338 = pneg %p142
        %p339 = pneg %p139
        %p340 = pneg %p163
        %p341 = pneg %p160
        %p342 = pneg %p191
        %p343 = pneg %p188
        %s344 = sand.u32 %s178, 1
        %s345 = scalar_lea.sflag [#allocation7], %s344
        %s346 = sand.u32 %s178, 1
        %s347 = smul.addr %s346, 8
        %s348 = scalar_lea.vmem [#allocation14], %s347
        %s350 = smul.u32 %s30, 8
        %p351 = scmp.eq.s32.totalorder %s30, 0
        // Predicated region
        $region65: #{tpu_custom_call.1} parent=43 // pred_check
          %p352 = pneg %p351
        $region66: #{tpu_custom_call.1} parent=43 // pred_check_branch
          %354 = sbr.rel (%p352) target = $region68
        $region67: #{tpu_custom_call.1} parent=43 // pred_region
          %v355 = vld [vmem:[%s299] sm:$0xf]
          %v356 = vld [vmem:[#allocation10] sm:$0xf]
          %v357 = vld [vmem:[#allocation10 + $0x4] sm:$0xf]
          %v358 = vld [vmem:[#allocation10 + $0x8] sm:$0xf]
          %v359 = vld [vmem:[#allocation10 + $0xc] sm:$0xf]
          %v364 = vunpack.c.l.b16 %v356
          %v365 = vunpack.c.l.b16 %v357
          %v366 = vunpack.c.l.b16 %v358
          %v367 = vunpack.c.l.b16 %v359
          %v368 = vpack.c.b16 %v365, %v364
          %v369 = vpack.c.b16 %v367, %v366
          %vm372 = vcmask 261120
          %v374 = vsel %vm372, %v355, 0
          %376 = vmatpush.bf16.msra.mxu0 0
          %377 = vmatpush.bf16.msra.mxu0 0
          %378 = vmatpush.bf16.msra.mxu0 0
          %379 = vmatpush.bf16.msra.mxu0 0
          %380 = vmatpush.bf16.msra.mxu0 0
          %381 = vmatpush.bf16.msra.mxu0 0
          %382 = vmatpush.bf16.msra.mxu0 %v369
          %383 = vmatpush.bf16.msra.mxu0 %v368
          %384 = vmatmul.bf16.gmra.mxu0 %v374
          %v385 = vpop.f32.mrf.mxu0
          %v386 = vadd.f32 0.0, %v385
          %v387 = vpop.f32.mrf.mxu0
          %388 = vdwg.mxu0
          %v389 = vpack.c.bf16 %v386, %v386
          %vm390 = vcmask 257024
          %391 = vst.msk [vmem:[#allocation2] sm:$0xf] %vm390, %v389
          %v392 = vld [vmem:[#allocation11] sm:$0xf]
          %v393 = vld [vmem:[#allocation11 + $0x4] sm:$0xf]
          %v394 = vld [vmem:[#allocation11 + $0x8] sm:$0xf]
          %v395 = vld [vmem:[#allocation11 + $0xc] sm:$0xf]
          %v400 = vunpack.c.l.b16 %v392
          %v401 = vunpack.c.l.b16 %v393
          %v402 = vunpack.c.l.b16 %v394
          %v403 = vunpack.c.l.b16 %v395
          %v404 = vpack.c.b16 %v401, %v400
          %v405 = vpack.c.b16 %v403, %v402
          %408 = vmatpush.bf16.msra.mxu0 0
          %409 = vmatpush.bf16.msra.mxu0 0
          %410 = vmatpush.bf16.msra.mxu0 0
          %411 = vmatpush.bf16.msra.mxu0 0
          %412 = vmatpush.bf16.msra.mxu0 0
          %413 = vmatpush.bf16.msra.mxu0 0
          %414 = vmatpush.bf16.msra.mxu0 %v405
          %415 = vmatpush.bf16.msra.mxu0 %v404
          %416 = vmatmul.bf16.gmra.mxu0 %v374
          %v417 = vpop.f32.mrf.mxu0
          %v418 = vadd.f32 0.0, %v417
          %v419 = vpop.f32.mrf.mxu0
          %420 = vdwg.mxu0
          %v421 = vpack.c.bf16 %v418, %v418
          %422 = vst.msk [vmem:[#allocation3] sm:$0xf] %vm390, %v421
        $region68: #{tpu_custom_call.1} parent=43 // pred_fallthru
          _
        %v423 = vld [vmem:[%s299] sm:$0xf]
        %v424 = vld [vmem:[#allocation8] sm:$0xf]
        %v425 = vld [vmem:[#allocation8 + $0x4] sm:$0xf]
        %v426 = vld [vmem:[#allocation8 + $0x8] sm:$0xf]
        %v427 = vld [vmem:[#allocation8 + $0xc] sm:$0xf]
        %v432 = vunpack.c.l.b16 %v424
        %v433 = vunpack.c.l.b16 %v425
        %v434 = vunpack.c.l.b16 %v426
        %v435 = vunpack.c.l.b16 %v427
        %v436 = vpack.c.b16 %v433, %v432
        %v437 = vpack.c.b16 %v435, %v434
        %vm440 = vcmask 261120
        %v442 = vsel %vm440, %v423, 0
        %444 = vmatpush.bf16.msra.mxu0 0
        %445 = vmatpush.bf16.msra.mxu0 0
        %446 = vmatpush.bf16.msra.mxu0 0
        %447 = vmatpush.bf16.msra.mxu0 0
        %448 = vmatpush.bf16.msra.mxu0 0
        %449 = vmatpush.bf16.msra.mxu0 0
        %450 = vmatpush.bf16.msra.mxu0 %v437
        %451 = vmatpush.bf16.msra.mxu0 %v436
        %452 = vmatmul.bf16.gmra.mxu0 %v442
        %v453 = vpop.f32.mrf.mxu0
        %v454 = vadd.f32 0.0, %v453
        %v455 = vpop.f32.mrf.mxu0
        %456 = vdwg.mxu0
        %v457 = vpack.c.bf16 %v454, %v454
        %v458 = vlaneseq
        %v459 = vshrl.u32 %v458, 7
        %v460 = vstv %s350
        %v461 = vadd.s32 %v459, %v460
        %v462 = vlaneseq
        %v463 = vand.u32 %v462, 127
        %vm464 = vcmp.le.s32.totalorder %v463, %v461
        %v465 = vld [vmem:[#allocation2] sm:$0xf]
        %v466 = vld [vmem:[#allocation3] sm:$0xf]
        %vm467 = vcmask 64512
        %v469 = vsel %vm467, %v457, 0
        %v472 = vsel %vm467, %v465, 0
        %474 = vmatpush.bf16.xpose.msra.mxu0 0
        %475 = vmatpush.bf16.xpose.msra.mxu0 0
        %476 = vmatpush.bf16.xpose.msra.mxu0 0
        %477 = vmatpush.bf16.xpose.msra.mxu0 0
        %478 = vmatpush.bf16.xpose.msra.mxu0 0
        %479 = vmatpush.bf16.xpose.msra.mxu0 0
        %480 = vmatpush.bf16.xpose.msra.mxu0 0
        %481 = vmatpush.bf16.xpose.msra.mxu0 %v472
        %482 = vmatmul.bf16.gmra.mxu0 %v469
        %v483 = vpop.f32.mrf.mxu0
        %v484 = vadd.f32 0.0, %v483
        %v485 = vpop.f32.mrf.mxu0
        %486 = vdwg.mxu0
        %v487 = vsel %vm464, %v484, -1e+30
        %v488 = vsel %vm467, %v487, -inf
        %489 = vmax.xlane.f32.xlu0 %v488
        %v490 = vpop.xlane.xlu0 %489
        %v491 = vsub.f32 %v487, %v490
        %v492 = vmul.f32 %v491, 1.442695
        %v493 = vpow.pop %v492
        %v494 = vsel %vm467, %v493, 0.0
        %495 = vadd.xlane.f32.xlu0 %v494
        %v496 = vpop.xlane.xlu0 %495
        %v497 = vrcp.pop %v496
        %v498 = vmul.f32 %v493, %v497
        %v499 = vpack.c.bf16 %v498, %v498
        %v501 = vsel %vm467, %v499, 0
        %vm503 = vcmask 1043456
        %v505 = vsel %vm503, %v466, 0
        %507 = vmatpush.bf16.msra.mxu0 0
        %508 = vmatpush.bf16.msra.mxu0 0
        %509 = vmatpush.bf16.msra.mxu0 0
        %510 = vmatpush.bf16.msra.mxu0 0
        %511 = vmatpush.bf16.msra.mxu0 0
        %512 = vmatpush.bf16.msra.mxu0 0
        %513 = vmatpush.bf16.msra.mxu0 0
        %514 = vmatpush.bf16.msra.mxu0 %v505
        %515 = vmatmul.bf16.gmra.mxu0 %v501
        %v516 = vpop.f32.mrf.mxu0
        %v517 = vadd.f32 0.0, %v516
        %v518 = vpop.f32.mrf.mxu0
        %519 = vdwg.mxu0
        %520 = vst.msk [vmem:[#allocation4] sm:$0xff] %vm467, %v517
        %v522 = vunpack.c.l.b16 %v457
        %v523 = vpack.c.b16 %v522, %v522
        %524 = vrot.lane.b32.xlu0 %v523, 120
        %v525 = vpop.permute.xlu0 %524
        %v527 = vunpack.c.l.b16 %v465
        %v528 = vpack.c.b16 %v527, %v527
        %529 = vrot.lane.b32.xlu0 %v528, 120
        %v530 = vpop.permute.xlu0 %529
        %v532 = vsel %vm467, %v525, 0
        %v535 = vsel %vm467, %v530, 0
        %537 = vmatpush.bf16.xpose.msra.mxu0 0
        %538 = vmatpush.bf16.xpose.msra.mxu0 0
        %539 = vmatpush.bf16.xpose.msra.mxu0 0
        %540 = vmatpush.bf16.xpose.msra.mxu0 0
        %541 = vmatpush.bf16.xpose.msra.mxu0 0
        %542 = vmatpush.bf16.xpose.msra.mxu0 0
        %543 = vmatpush.bf16.xpose.msra.mxu0 0
        %544 = vmatpush.bf16.xpose.msra.mxu0 %v535
        %545 = vmatmul.bf16.gmra.mxu0 %v532
        %v546 = vpop.f32.mrf.mxu0
        %v547 = vadd.f32 0.0, %v546
        %v548 = vpop.f32.mrf.mxu0
        %549 = vdwg.mxu0
        %v550 = vsel %vm464, %v547, -1e+30
        %v551 = vsel %vm467, %v550, -inf
        %552 = vmax.xlane.f32.xlu0 %v551
        %v553 = vpop.xlane.xlu0 %552
        %v554 = vsub.f32 %v550, %v553
        %v555 = vmul.f32 %v554, 1.442695
        %v556 = vpow.pop %v555
        %v557 = vsel %vm467, %v556, 0.0
        %558 = vadd.xlane.f32.xlu0 %v557
        %v559 = vpop.xlane.xlu0 %558
        %v560 = vrcp.pop %v559
        %v561 = vmul.f32 %v556, %v560
        %v562 = vpack.c.bf16 %v561, %v561
        %v564 = vunpack.c.l.b16 %v466
        %v565 = vpack.c.b16 %v564, %v564
        %566 = vrot.lane.b32.xlu0 %v565, 120
        %v567 = vpop.permute.xlu0 %566
        %v569 = vsel %vm467, %v562, 0
        %v572 = vsel %vm503, %v567, 0
        %574 = vmatpush.bf16.msra.mxu0 0
        %575 = vmatpush.bf16.msra.mxu0 0
        %576 = vmatpush.bf16.msra.mxu0 0
        %577 = vmatpush.bf16.msra.mxu0 0
        %578 = vmatpush.bf16.msra.mxu0 0
        %579 = vmatpush.bf16.msra.mxu0 0
        %580 = vmatpush.bf16.msra.mxu0 0
        %581 = vmatpush.bf16.msra.mxu0 %v572
        %582 = vmatmul.bf16.gmra.mxu0 %v569
        %v583 = vpop.f32.mrf.mxu0
        %v584 = vadd.f32 0.0, %v583
        %v585 = vpop.f32.mrf.mxu0
        %586 = vdwg.mxu0
        %588 = vrot.lane.b32.xlu0 %v584, 8
        %v589 = vpop.permute.xlu0 %588
        %vm591 = vcmask 130112
        %592 = vst.msk [vmem:[#allocation4] sm:$0xff] %vm591, %v589
        %593 = vrot.lane.b32.xlu0 %v523, 112
        %v594 = vpop.permute.xlu0 %593
        %595 = vrot.lane.b32.xlu0 %v528, 112
        %v596 = vpop.permute.xlu0 %595
        %v598 = vsel %vm467, %v594, 0
        %v601 = vsel %vm467, %v596, 0
        %603 = vmatpush.bf16.xpose.msra.mxu0 0
        %604 = vmatpush.bf16.xpose.msra.mxu0 0
        %605 = vmatpush.bf16.xpose.msra.mxu0 0
        %606 = vmatpush.bf16.xpose.msra.mxu0 0
        %607 = vmatpush.bf16.xpose.msra.mxu0 0
        %608 = vmatpush.bf16.xpose.msra.mxu0 0
        %609 = vmatpush.bf16.xpose.msra.mxu0 0
        %610 = vmatpush.bf16.xpose.msra.mxu0 %v601
        %611 = vmatmul.bf16.gmra.mxu0 %v598
        %v612 = vpop.f32.mrf.mxu0
        %v613 = vadd.f32 0.0, %v612
        %v614 = vpop.f32.mrf.mxu0
        %615 = vdwg.mxu0
        %v616 = vsel %vm464, %v613, -1e+30
        %v617 = vsel %vm467, %v616, -inf
        %618 = vmax.xlane.f32.xlu0 %v617
        %v619 = vpop.xlane.xlu0 %618
        %v620 = vsub.f32 %v616, %v619
        %v621 = vmul.f32 %v620, 1.442695
        %v622 = vpow.pop %v621
        %v623 = vsel %vm467, %v622, 0.0
        %624 = vadd.xlane.f32.xlu0 %v623
        %v625 = vpop.xlane.xlu0 %624
        %v626 = vrcp.pop %v625
        %v627 = vmul.f32 %v622, %v626
        %v628 = vpack.c.bf16 %v627, %v627
        %629 = vrot.lane.b32.xlu0 %v565, 112
        %v630 = vpop.permute.xlu0 %629
        %v632 = vsel %vm467, %v628, 0
        %v635 = vsel %vm503, %v630, 0
        %637 = vmatpush.bf16.msra.mxu0 0
        %638 = vmatpush.bf16.msra.mxu0 0
        %639 = vmatpush.bf16.msra.mxu0 0
        %640 = vmatpush.bf16.msra.mxu0 0
        %641 = vmatpush.bf16.msra.mxu0 0
        %642 = vmatpush.bf16.msra.mxu0 0
        %643 = vmatpush.bf16.msra.mxu0 0
        %644 = vmatpush.bf16.msra.mxu0 %v635
        %645 = vmatmul.bf16.gmra.mxu0 %v632
        %v646 = vpop.f32.mrf.mxu0
        %v647 = vadd.f32 0.0, %v646
        %v648 = vpop.f32.mrf.mxu0
        %649 = vdwg.mxu0
        %651 = vrot.lane.b32.xlu0 %v647, 16
        %v652 = vpop.permute.xlu0 %651
        %vm654 = vcmask 195712
        %655 = vst.msk [vmem:[#allocation4] sm:$0xff] %vm654, %v652
        %656 = vrot.lane.b32.xlu0 %v523, 104
        %v657 = vpop.permute.xlu0 %656
        %658 = vrot.lane.b32.xlu0 %v528, 104
        %v659 = vpop.permute.xlu0 %658
        %v661 = vsel %vm467, %v657, 0
        %v664 = vsel %vm467, %v659, 0
        %666 = vmatpush.bf16.xpose.msra.mxu0 0
        %667 = vmatpush.bf16.xpose.msra.mxu0 0
        %668 = vmatpush.bf16.xpose.msra.mxu0 0
        %669 = vmatpush.bf16.xpose.msra.mxu0 0
        %670 = vmatpush.bf16.xpose.msra.mxu0 0
        %671 = vmatpush.bf16.xpose.msra.mxu0 0
        %672 = vmatpush.bf16.xpose.msra.mxu0 0
        %673 = vmatpush.bf16.xpose.msra.mxu0 %v664
        %674 = vmatmul.bf16.gmra.mxu0 %v661
        %v675 = vpop.f32.mrf.mxu0
        %v676 = vadd.f32 0.0, %v675
        %v677 = vpop.f32.mrf.mxu0
        %678 = vdwg.mxu0
        %v679 = vsel %vm464, %v676, -1e+30
        %v680 = vsel %vm467, %v679, -inf
        %681 = vmax.xlane.f32.xlu0 %v680
        %v682 = vpop.xlane.xlu0 %681
        %v683 = vsub.f32 %v679, %v682
        %v684 = vmul.f32 %v683, 1.442695
        %v685 = vpow.pop %v684
        %v686 = vsel %vm467, %v685, 0.0
        %687 = vadd.xlane.f32.xlu0 %v686
        %v688 = vpop.xlane.xlu0 %687
        %v689 = vrcp.pop %v688
        %v690 = vmul.f32 %v685, %v689
        %v691 = vpack.c.bf16 %v690, %v690
        %692 = vrot.lane.b32.xlu0 %v565, 104
        %v693 = vpop.permute.xlu0 %692
        %v695 = vsel %vm467, %v691, 0
        %v698 = vsel %vm503, %v693, 0
        %700 = vmatpush.bf16.msra.mxu0 0
        %701 = vmatpush.bf16.msra.mxu0 0
        %702 = vmatpush.bf16.msra.mxu0 0
        %703 = vmatpush.bf16.msra.mxu0 0
        %704 = vmatpush.bf16.msra.mxu0 0
        %705 = vmatpush.bf16.msra.mxu0 0
        %706 = vmatpush.bf16.msra.mxu0 0
        %707 = vmatpush.bf16.msra.mxu0 %v698
        %708 = vmatmul.bf16.gmra.mxu0 %v695
        %v709 = vpop.f32.mrf.mxu0
        %v710 = vadd.f32 0.0, %v709
        %v711 = vpop.f32.mrf.mxu0
        %712 = vdwg.mxu0
        %714 = vrot.lane.b32.xlu0 %v710, 24
        %v715 = vpop.permute.xlu0 %714
        %vm717 = vcmask 261312
        %718 = vst.msk [vmem:[#allocation4] sm:$0xff] %vm717, %v715
        %v719 = vld [vmem:[#allocation4] sm:$0xff]
        %v720 = vpack.c.bf16 %v719, %v719
        %v721 = vld [vmem:[#allocation13] sm:$0xf]
        %v722 = vld [vmem:[#allocation13 + $0x4] sm:$0xf]
        %v723 = vld [vmem:[#allocation13 + $0x8] sm:$0xf]
        %v724 = vld [vmem:[#allocation13 + $0xc] sm:$0xf]
        %v725 = vld [vmem:[%s5] sm:$0x1]
        %v727 = vperm.slane %v725, 0
        %v733 = vunpack.c.l.b16 %v721
        %v734 = vunpack.c.l.b16 %v722
        %v735 = vunpack.c.l.b16 %v723
        %v736 = vunpack.c.l.b16 %v724
        %v737 = vpack.c.b16 %v734, %v733
        %v738 = vpack.c.b16 %v736, %v735
        %v742 = vsel %vm440, %v720, 0
        %744 = vmatpush.bf16.msra.mxu0 0
        %745 = vmatpush.bf16.msra.mxu0 0
        %746 = vmatpush.bf16.msra.mxu0 0
        %747 = vmatpush.bf16.msra.mxu0 0
        %748 = vmatpush.bf16.msra.mxu0 0
        %749 = vmatpush.bf16.msra.mxu0 0
        %750 = vmatpush.bf16.msra.mxu0 %v738
        %751 = vmatpush.bf16.msra.mxu0 %v737
        %752 = vmatmul.bf16.gmra.mxu0 %v742
        %v753 = vpop.f32.mrf.mxu0
        %v754 = vadd.f32 %v727, %v753
        %v755 = vpop.f32.mrf.mxu0
        %756 = vdwg.mxu0
        %757 = vst [vmem:[%s348] sm:$0xff] %v754
        %s758 = sand.u32 %s178, 1
        %s759 = scalar_lea.sflag [#allocation7], %s758
        %s760 = sand.u32 %s178, 1
        %s761 = smul.addr %s760, 8
        %s762 = scalar_lea.vmem [#allocation14], %s761
        // Predicated region
        $region69: #{tpu_custom_call.1} parent=43 // pred_check
          %p763 = pneg %p188
        $region70: #{tpu_custom_call.1} parent=43 // pred_check_branch
          %765 = sbr.rel (%p763) target = $region72
        $region71: #{tpu_custom_call.1} parent=43 // pred_region
          %767 = vsyncadd %s759, 0
          %s768 = sadd.s32 %s30, %s29
          %s769 = smul.addr %s768, 8
          %s770 = scalar_lea.hbm %s6, %s769
          %s772 = sshll.u32 %s762, 4
          %s773 = int_to_ptr.vmem [resolvable:$true] %s772
          %s774 = sshll.u32 %s770, 4
          %s775 = int_to_ptr.hbm [resolvable:$true] %s774
          %777 = dma.vmem_to_hbm [thread:$0]  %s773, 128, %s775, %s759
        $region72: #{tpu_custom_call.1} parent=43 // pred_fallthru
          _
      $region44: #{tpu_custom_call.1} parent=5 // pred_fallthru
        _
      %p778 = scmp.le.s32.totalorder 2, %s20
      // Predicated region
      $region73: #{tpu_custom_call.1} parent=5 // pred_check
        %p779 = pneg %p778
      $region74: #{tpu_custom_call.1} parent=5 // pred_check_branch
        %781 = sbr.rel (%p779) target = $region76
      $region75: #{tpu_custom_call.1} parent=5 // pred_region
        %s782 = ssub.s32 %s20, 2
        // Predicated region
        $region77: #{tpu_custom_call.1} parent=75 // pred_check
          %p783 = pneg %p194
        $region78: #{tpu_custom_call.1} parent=75 // pred_check_branch
          %785 = sbr.rel (%p783) target = $region80
        $region79: #{tpu_custom_call.1} parent=75 // pred_region
          %s786 = sand.u32 %s179, 1
          %s787 = scalar_lea.sflag [#allocation7], %s786
          %s788 = sand.u32 %s179, 1
          %s789 = smul.addr %s788, 8
          %s790 = scalar_lea.vmem [#allocation14], %s789
          %792 = dma.done %s787, 128
        $region80: #{tpu_custom_call.1} parent=75 // pred_fallthru
          _
      $region76: #{tpu_custom_call.1} parent=5 // pred_fallthru
        _
    $region6: #{tpu_custom_call.1} parent=1 // loop_footer
      %s24 = sadd.s32 1, %s20
    $region7: #{tpu_custom_call.1} parent=1 // loop_footer_branch
      %19 = sbr.rel target = $region3
    $region8: #{tpu_custom_call.1} parent=1 // loop_exit
      _
    %793 = vsyncpa [#allocation6], 1
    %s794 = scalar_lea.sflag [#allocation6], 1
    %795 = vsyncpa %s794, 1
    %796 = vsyncpa [#allocation9], 1
    %797 = vsyncpa [#allocation12], 1
    %798 = vsyncpa [#allocation7], 1
    %s799 = scalar_lea.sflag [#allocation7], 1
    %800 = vsyncpa %s799, 1

</llo_original>
